<compile_context>
chip_gen: v5e
topology: v5e:2x2
jax: 0.10.0
libtpu: 0.0.40
codegen_flags: <defaults>
</compile_context>

<pallas_src>
import math
import functools

import jax
import jax.numpy as jnp
from jax.experimental import pallas as pl
from jax.experimental.pallas import tpu as pltpu


def _round_up(a, b):
    return (a + b - 1) // b * b


def _loss_kernel(y_ref, lbl_ref, out_ref, m_sc, d_sc, amax_sc, xt_sc, *, col_tile):
    """One (row_tile, col_tile) block of the online-softmax / argmax pass."""
    j = pl.program_id(1)

    x = y_ref[...].astype(jnp.float32)          # (RT, CT) — upcast in-kernel
    lbl = lbl_ref[...]                          # (RT, 1) int32

    @pl.when(j == 0)
    def _():
        m_sc[...] = jnp.full_like(m_sc, -jnp.inf)
        d_sc[...] = jnp.zeros_like(d_sc)
        amax_sc[...] = jnp.zeros_like(amax_sc)
        xt_sc[...] = jnp.zeros_like(xt_sc)

    # global class index of each lane in this tile
    col = jax.lax.broadcasted_iota(jnp.int32, x.shape, 1) + j * col_tile

    # tile max and first-occurrence argmax (via min of matching column index)
    tmax = jnp.max(x, axis=-1, keepdims=True)                               # (RT,1)
    big = jnp.int32(2 ** 30)
    tidx = jnp.min(jnp.where(x == tmax, col, big), axis=-1, keepdims=True)  # (RT,1)

    m_old = m_sc[...]
    m_new = jnp.maximum(m_old, tmax)
    upd = tmax > m_old                          # strict > keeps first occurrence
    amax_sc[...] = jnp.where(upd, tidx, amax_sc[...])
    m_sc[...] = m_new

    # online softmax denominator:  d = d * exp(m_old - m_new) + sum exp(x - m_new)
    d_sc[...] = d_sc[...] * jnp.exp(m_old - m_new) + jnp.sum(
        jnp.exp(x - m_new), axis=-1, keepdims=True)

    # gather the logit at the true-label column (exactly one class tile matches)
    xt_sc[...] += jnp.sum(jnp.where(col == lbl, x, 0.0), axis=-1, keepdims=True)

    @pl.when(j == pl.num_programs(1) - 1)
    def _():
        p_true = jnp.exp(xt_sc[...] - m_sc[...]) / d_sc[...]   # softmax at label
        hit = amax_sc[...] == lbl                              # argmax == label ?
        out_ref[...] = jnp.where(hit, p_true, jnp.zeros_like(p_true))


def loss_supervised(y_pred, y_true, *, row_tile=256, col_tile=2048):
    """y_pred: (N, C) float, y_true: (N,) int  ->  scalar loss (float32)."""
    N, C = y_pred.shape

    # lane-dense class tile (multiple of 128), row tile multiple of 8
    ct = min(col_tile, _round_up(C, 128))
    rt = min(row_tile, _round_up(N, 8))
    Np = _round_up(N, rt)
    Cp = _round_up(C, ct)

    if (Np, Cp) != (N, C):
        # pad with a very negative finite value: exp underflows to 0, never argmax
        y_pred = jnp.pad(y_pred, ((0, Np - N), (0, Cp - C)),
                         constant_values=-1e30)
    if Np != N:
        y_true = jnp.pad(y_true, (0, Np - N))
    label2d = y_true.astype(jnp.int32).reshape(Np, 1)

    kernel = functools.partial(_loss_kernel, col_tile=ct)

    contrib = pl.pallas_call(
        kernel,
        out_shape=jax.ShapeDtypeStruct((Np, 1), jnp.float32),
        grid_spec=pltpu.PrefetchScalarGridSpec(
            num_scalar_prefetch=0,
            grid=(Np // rt, Cp // ct),          # rows parallel, classes = reduction (last)
            in_specs=[
                pl.BlockSpec((rt, ct), lambda i, j: (i, j)),
                pl.BlockSpec((rt, 1), lambda i, j: (i, 0)),
            ],
            out_specs=pl.BlockSpec((rt, 1), lambda i, j: (i, 0)),
            scratch_shapes=[
                pltpu.VMEM((rt, 1), jnp.float32),   # running max
                pltpu.VMEM((rt, 1), jnp.float32),   # running exp-sum
                pltpu.VMEM((rt, 1), jnp.int32),     # running argmax index
                pltpu.VMEM((rt, 1), jnp.float32),   # logit at true label
            ]),
        compiler_params=pltpu.CompilerParams(
            dimension_semantics=("parallel", "arbitrary")),
    )(y_pred, label2d)

    # final tiny O(N) reduction: mean(1 - contrib) = 1 - mean(contrib)
    return 1.0 - jnp.mean(contrib[:N, 0])


def _reference(y_pred, y_true):
    """Pure-JAX mirror of the PyTorch LossSupervisedNew.forward."""
    n, c = y_pred.shape
    pred_lbl = jnp.argmax(y_pred, axis=1)
    pred_oh = jax.nn.one_hot(pred_lbl, c, dtype=jnp.float32)
    true_oh = jax.nn.one_hot(y_true, c, dtype=jnp.float32)
    p = jax.nn.softmax(y_pred.astype(jnp.float32), axis=1)
    return jnp.mean(1.0 - jnp.sum(pred_oh * true_oh * p, axis=1))


if __name__ == "__main__":
    key = jax.random.PRNGKey(0)
    k1, k2, k3, k4 = jax.random.split(key, 4)

    # Case 1: small, non-divisible shapes; force multi-tile grid over rows & classes
    N1, C1 = 12, 300
    y_pred1 = jax.random.normal(k1, (N1, C1), jnp.float32) * 3.0
    y_true1 = jax.random.randint(k2, (N1,), 0, C1, dtype=jnp.int32)
    out1 = jax.block_until_ready(loss_supervised(y_pred1, y_true1,
                                                 row_tile=8, col_tile=128))
    ref1 = _reference(y_pred1, y_true1)
    assert jnp.allclose(out1, ref1, atol=1e-5, rtol=1e-5), (out1, ref1)

    # Case 2: default tile path (single block), different shape
    N2, C2 = 64, 640
    y_pred2 = jax.random.normal(k3, (N2, C2), jnp.float32) * 2.0
    y_true2 = jax.random.randint(k4, (N2,), 0, C2, dtype=jnp.int32)
    out2 = jax.block_until_ready(loss_supervised(y_pred2, y_true2))
    ref2 = _reference(y_pred2, y_true2)
    assert jnp.allclose(out2, ref2, atol=1e-5, rtol=1e-5), (out2, ref2)

    print("KERNEL_OK")
</pallas_src>

<mosaic_0001>
module attributes {stable_mosaic.version = 11 : i64} {
  func.func @_loss_kernel(%arg0: i32, %arg1: i32, %arg2: memref<8x128xf32, #tpu.memory_space<vmem>>, %arg3: memref<8x1xi32, #tpu.memory_space<vmem>>, %arg4: memref<8x1xf32, #tpu.memory_space<vmem>>, %arg5: memref<8x1xf32, #tpu.memory_space<vmem>>, %arg6: memref<8x1xf32, #tpu.memory_space<vmem>>, %arg7: memref<8x1xi32, #tpu.memory_space<vmem>>, %arg8: memref<8x1xf32, #tpu.memory_space<vmem>>) attributes {dimension_semantics = [#tpu.dimension_semantics<parallel>, #tpu.dimension_semantics<arbitrary>], iteration_bounds = array<i64: 2, 3>, scalar_prefetch = 0 : i64, scratch_operands = 4 : i64, tpu.core_type = #tpu.core_type<tc>, window_params = [{transform_indices = @transform_0, window_bounds = array<i64: 8, 128>}, {transform_indices = @transform_1, window_bounds = array<i64: 8, 1>}, {transform_indices = @transform_2, window_bounds = array<i64: 8, 1>}]} {
    %c0 = arith.constant 0 : index
    %c0_0 = arith.constant 0 : index
    %0 = vector.load %arg2[%c0, %c0_0] : memref<8x128xf32, #tpu.memory_space<vmem>>, vector<8x128xf32>
    %c0_1 = arith.constant 0 : index
    %c0_2 = arith.constant 0 : index
    %1 = vector.load %arg3[%c0_1, %c0_2] : memref<8x1xi32, #tpu.memory_space<vmem>>, vector<8x1xi32>
    %c0_i32 = arith.constant 0 : i32
    %2 = arith.cmpi eq, %arg1, %c0_i32 : i32
    %3 = arith.extui %2 : i1 to i32
    %c0_i32_3 = arith.constant 0 : i32
    %4 = arith.cmpi ne, %3, %c0_i32_3 : i32
    scf.if %4 {
      %cst_25 = arith.constant 0xFF800000 : f32
      %47 = vector.broadcast %cst_25 : f32 to vector<8x1xf32>
      %c0_26 = arith.constant 0 : index
      %c0_27 = arith.constant 0 : index
      %48 = vector.load %arg5[%c0_26, %c0_27] : memref<8x1xf32, #tpu.memory_space<vmem>>, vector<8x1xf32>
      tpu.vector_store %arg5[%c0_26, %c0_27], %47 {strides = array<i32>} : memref<8x1xf32, #tpu.memory_space<vmem>>, vector<8x1xf32>,
      %cst_28 = arith.constant 0.000000e+00 : f32
      %49 = vector.broadcast %cst_28 : f32 to vector<8x1xf32>
      %c0_29 = arith.constant 0 : index
      %c0_30 = arith.constant 0 : index
      %50 = vector.load %arg6[%c0_29, %c0_30] : memref<8x1xf32, #tpu.memory_space<vmem>>, vector<8x1xf32>
      tpu.vector_store %arg6[%c0_29, %c0_30], %49 {strides = array<i32>} : memref<8x1xf32, #tpu.memory_space<vmem>>, vector<8x1xf32>,
      %c0_i32_31 = arith.constant 0 : i32
      %51 = vector.broadcast %c0_i32_31 : i32 to vector<8x1xi32>
      %c0_32 = arith.constant 0 : index
      %c0_33 = arith.constant 0 : index
      %52 = vector.load %arg7[%c0_32, %c0_33] : memref<8x1xi32, #tpu.memory_space<vmem>>, vector<8x1xi32>
      tpu.vector_store %arg7[%c0_32, %c0_33], %51 {strides = array<i32>} : memref<8x1xi32, #tpu.memory_space<vmem>>, vector<8x1xi32>,
      %cst_34 = arith.constant 0.000000e+00 : f32
      %53 = vector.broadcast %cst_34 : f32 to vector<8x1xf32>
      %c0_35 = arith.constant 0 : index
      %c0_36 = arith.constant 0 : index
      %54 = vector.load %arg8[%c0_35, %c0_36] : memref<8x1xf32, #tpu.memory_space<vmem>>, vector<8x1xf32>
      tpu.vector_store %arg8[%c0_35, %c0_36], %53 {strides = array<i32>} : memref<8x1xf32, #tpu.memory_space<vmem>>, vector<8x1xf32>,
    } else {
    }
    %5 = tpu.iota {dimensions = array<i32: 1>} : vector<8x128xi32>
    %c128_i32 = arith.constant 128 : i32
    %6 = arith.muli %arg1, %c128_i32 : i32
    %7 = vector.broadcast %6 : i32 to vector<8x128xi32>
    %8 = arith.addi %5, %7 : vector<8x128xi32>
    %cst = arith.constant dense<0xFF800000> : vector<8xf32>
    %9 = vector.multi_reduction <maximumf>, %0, %cst [1] : vector<8x128xf32> to vector<8xf32>
    %10 = vector.shape_cast %9 : vector<8xf32> to vector<8x1xf32>
    %11 = vector.broadcast %10 : vector<8x1xf32> to vector<8x128xf32>
    %12 = arith.cmpf oeq, %0, %11 : vector<8x128xf32>
    %c1073741824_i32 = arith.constant 1073741824 : i32
    %13 = vector.broadcast %c1073741824_i32 : i32 to vector<8x128xi32>
    %14 = arith.select %12, %8, %13 : vector<8x128xi1>, vector<8x128xi32>
    %cst_4 = arith.constant dense<2147483647> : vector<8xi32>
    %15 = vector.multi_reduction <minsi>, %14, %cst_4 [1] : vector<8x128xi32> to vector<8xi32>
    %16 = vector.shape_cast %15 : vector<8xi32> to vector<8x1xi32>
    %c0_5 = arith.constant 0 : index
    %c0_6 = arith.constant 0 : index
    %17 = vector.load %arg5[%c0_5, %c0_6] : memref<8x1xf32, #tpu.memory_space<vmem>>, vector<8x1xf32>
    %18 = arith.maximumf %17, %10 : vector<8x1xf32>
    %19 = arith.cmpf ogt, %10, %17 : vector<8x1xf32>
    %c0_7 = arith.constant 0 : index
    %c0_8 = arith.constant 0 : index
    %20 = vector.load %arg7[%c0_7, %c0_8] : memref<8x1xi32, #tpu.memory_space<vmem>>, vector<8x1xi32>
    %21 = arith.select %19, %16, %20 : vector<8x1xi1>, vector<8x1xi32>
    %c0_9 = arith.constant 0 : index
    %c0_10 = arith.constant 0 : index
    %22 = vector.load %arg7[%c0_9, %c0_10] : memref<8x1xi32, #tpu.memory_space<vmem>>, vector<8x1xi32>
    tpu.vector_store %arg7[%c0_9, %c0_10], %21 {strides = array<i32>} : memref<8x1xi32, #tpu.memory_space<vmem>>, vector<8x1xi32>,
    %c0_11 = arith.constant 0 : index
    %c0_12 = arith.constant 0 : index
    %23 = vector.load %arg5[%c0_11, %c0_12] : memref<8x1xf32, #tpu.memory_space<vmem>>, vector<8x1xf32>
    tpu.vector_store %arg5[%c0_11, %c0_12], %18 {strides = array<i32>} : memref<8x1xf32, #tpu.memory_space<vmem>>, vector<8x1xf32>,
    %c0_13 = arith.constant 0 : index
    %c0_14 = arith.constant 0 : index
    %24 = vector.load %arg6[%c0_13, %c0_14] : memref<8x1xf32, #tpu.memory_space<vmem>>, vector<8x1xf32>
    %25 = arith.subf %17, %18 : vector<8x1xf32>
    %26 = math.exp %25 : vector<8x1xf32>
    %27 = arith.mulf %24, %26 : vector<8x1xf32>
    %28 = vector.broadcast %18 : vector<8x1xf32> to vector<8x128xf32>
    %29 = arith.subf %0, %28 : vector<8x128xf32>
    %30 = math.exp %29 : vector<8x128xf32>
    %cst_15 = arith.constant dense<0.000000e+00> : vector<8xf32>
    %31 = vector.multi_reduction <add>, %30, %cst_15 [1] : vector<8x128xf32> to vector<8xf32>
    %32 = vector.shape_cast %31 : vector<8xf32> to vector<8x1xf32>
    %33 = arith.addf %27, %32 : vector<8x1xf32>
    %c0_16 = arith.constant 0 : index
    %c0_17 = arith.constant 0 : index
    %34 = vector.load %arg6[%c0_16, %c0_17] : memref<8x1xf32, #tpu.memory_space<vmem>>, vector<8x1xf32>
    tpu.vector_store %arg6[%c0_16, %c0_17], %33 {strides = array<i32>} : memref<8x1xf32, #tpu.memory_space<vmem>>, vector<8x1xf32>,
    %c0_18 = arith.constant 0 : index
    %c0_19 = arith.constant 0 : index
    %35 = vector.load %arg8[%c0_18, %c0_19] : memref<8x1xf32, #tpu.memory_space<vmem>>, vector<8x1xf32>
    %36 = vector.broadcast %1 : vector<8x1xi32> to vector<8x128xi32>
    %37 = arith.cmpi eq, %8, %36 : vector<8x128xi32>
    %cst_20 = arith.constant 0.000000e+00 : f32
    %38 = vector.broadcast %cst_20 : f32 to vector<8x128xf32>
    %39 = arith.select %37, %0, %38 : vector<8x128xi1>, vector<8x128xf32>
    %cst_21 = arith.constant dense<0.000000e+00> : vector<8xf32>
    %40 = vector.multi_reduction <add>, %39, %cst_21 [1] : vector<8x128xf32> to vector<8xf32>
    %41 = vector.shape_cast %40 : vector<8xf32> to vector<8x1xf32>
    %42 = arith.addf %35, %41 : vector<8x1xf32>
    %c0_22 = arith.constant 0 : index
    %c0_23 = arith.constant 0 : index
    %43 = vector.load %arg8[%c0_22, %c0_23] : memref<8x1xf32, #tpu.memory_space<vmem>>, vector<8x1xf32>
    tpu.vector_store %arg8[%c0_22, %c0_23], %42 {strides = array<i32>} : memref<8x1xf32, #tpu.memory_space<vmem>>, vector<8x1xf32>,
    %c2_i32 = arith.constant 2 : i32
    %44 = arith.cmpi eq, %arg1, %c2_i32 : i32
    %45 = arith.extui %44 : i1 to i32
    %c0_i32_24 = arith.constant 0 : i32
    %46 = arith.cmpi ne, %45, %c0_i32_24 : i32
    scf.if %46 {
      %c0_25 = arith.constant 0 : index
      %c0_26 = arith.constant 0 : index
      %47 = vector.load %arg8[%c0_25, %c0_26] : memref<8x1xf32, #tpu.memory_space<vmem>>, vector<8x1xf32>
      %c0_27 = arith.constant 0 : index
      %c0_28 = arith.constant 0 : index
      %48 = vector.load %arg5[%c0_27, %c0_28] : memref<8x1xf32, #tpu.memory_space<vmem>>, vector<8x1xf32>
      %49 = arith.subf %47, %48 : vector<8x1xf32>
      %50 = math.exp %49 : vector<8x1xf32>
      %c0_29 = arith.constant 0 : index
      %c0_30 = arith.constant 0 : index
      %51 = vector.load %arg6[%c0_29, %c0_30] : memref<8x1xf32, #tpu.memory_space<vmem>>, vector<8x1xf32>
      %52 = arith.divf %50, %51 : vector<8x1xf32>
      %c0_31 = arith.constant 0 : index
      %c0_32 = arith.constant 0 : index
      %53 = vector.load %arg7[%c0_31, %c0_32] : memref<8x1xi32, #tpu.memory_space<vmem>>, vector<8x1xi32>
      %54 = arith.cmpi eq, %53, %1 : vector<8x1xi32>
      %cst_33 = arith.constant 0.000000e+00 : f32
      %55 = vector.broadcast %cst_33 : f32 to vector<8x1xf32>
      %56 = arith.select %54, %52, %55 : vector<8x1xi1>, vector<8x1xf32>
      %c0_34 = arith.constant 0 : index
      %c0_35 = arith.constant 0 : index
      %57 = vector.load %arg4[%c0_34, %c0_35] : memref<8x1xf32, #tpu.memory_space<vmem>>, vector<8x1xf32>
      tpu.vector_store %arg4[%c0_34, %c0_35], %56 {strides = array<i32>} : memref<8x1xf32, #tpu.memory_space<vmem>>, vector<8x1xf32>,
    } else {
    }
    return
  }
  func.func @transform_0(%arg0: i32, %arg1: i32) -> (i32, i32) {
    %c0_i32 = arith.constant 0 : i32
    return %arg0, %arg1 : i32, i32
  }
  func.func @transform_1(%arg0: i32, %arg1: i32) -> (i32, i32) {
    %c0_i32 = arith.constant 0 : i32
    %c0_i32_0 = arith.constant 0 : i32
    return %arg0, %c0_i32 : i32, i32
  }
  func.func @transform_2(%arg0: i32, %arg1: i32) -> (i32, i32) {
    %c0_i32 = arith.constant 0 : i32
    %c0_i32_0 = arith.constant 0 : i32
    return %arg0, %c0_i32 : i32, i32
  }
}

</mosaic_0001>

<llo_original>
// kernel: tpu_custom_call.1
$region0: #{tpu_custom_call.1}
  #allocation0 [shape = 'u32[]', space=smem, size = 0x4, offset = 0x4, fixed_abs, tag = 'smem constant byte address 0x4 - core index']
  #allocation1 [shape = 'u32[72,128]{1,0:T(1,128)}', space=vmem, size = 0x9000, scoped, tag = 'internal scratch']
  #allocation2 [shape = 'f32[8,1]{1,0:T(8,128)}', space=vmem, size = 0x1000, scoped, tag = 'scratch operand']
  #allocation3 [shape = 'f32[8,1]{1,0:T(8,128)}', space=vmem, size = 0x1000, scoped, tag = 'scratch operand']
  #allocation4 [shape = 's32[8,1]{1,0:T(8,128)}', space=vmem, size = 0x1000, scoped, tag = 'scratch operand']
  #allocation5 [shape = 'f32[8,1]{1,0:T(8,128)}', space=vmem, size = 0x1000, scoped, tag = 'scratch operand']
  %s0 = inlined_call_operand.hbm [shape: f32[16,384], index: 0, kind: input, shape index: {}]
  %s1 = inlined_call_operand.vmem [shape: s32[16,1], index: 1, kind: input, shape index: {}]
  %s2 = inlined_call_operand.vmem [shape: f32[16,1], index: 2, kind: output, shape index: {}]
  %s3 = sld [smem:[#allocation0]]
  $region53: #{tpu_custom_call.1} parent=0
    _
  %s5 = ssub.s32 1, %s3
  %s6 = scalar_select 0, %s5, %s3
  $region1: #{tpu_custom_call.1} parent=0
    #allocation6 [shape = 'u8[8192]{0}', space=vmem, size = 0x2000, scoped, tag = 'input window, operand 0']
    #allocation7 [shape = 's32[2]{0}', space=sflag, size = 0x8, scoped, tag = 'scoped memory for tpu_custom_call.1']
    %7 = vsyncpa [#allocation7], 0
    %s8 = scalar_lea.sflag [#allocation7], 1
    %9 = vsyncpa %s8, 0
    loop: start=0, step=1, limit=8
    $region2: #{tpu_custom_call.1} parent=1 // loop_pre_header
      _
    $region3: #{tpu_custom_call.1} parent=1 // loop_header
      %s11 = sphi 0, %s15
      %p12 = scmp.ge.s32.totalorder %s11, 8
      %s18 = sphi 0, %s30
      %s19 = sphi 0, %s26
      %s20 = sphi 0, %s18
      %s21 = sphi 0, %s19
      %s22 = sphi 0, %s20
      %s23 = sphi 0, %s21
      %s35 = sphi 0, %s37
      %s38 = sphi 0, %s35
      %s39 = sphi 0, %s38
      %s55 = sphi 0, %s39
      %s61 = sphi 0, %s63
      %s64 = sphi 0, %s61
      %s65 = sphi 0, %s64
      %s81 = sphi 0, %s65
      %s87 = sphi 0, %s89
      %s90 = sphi 0, %s87
      %s91 = sphi 0, %s90
      %s107 = sphi 0, %s91
    $region4: #{tpu_custom_call.1} parent=1 // loop_header_branch
      %14 = sbr.rel (%p12) target = $region8
    $region5: #{tpu_custom_call.1} parent=1 // loop_body
      %s16 = ssub.s32 %s11, 1
      %s17 = ssub.s32 %s11, 2
      %s24 = sadd.s32 1, %s19
      %p25 = scmp.ge.s32.totalorder %s24, 3
      %s26 = scalar_select %p25, 0, %s24
      %s27 = sadd.s32 1, %s18
      %s28 = scalar_select %p25, %s27, %s18
      %p29 = scmp.ge.s32.totalorder %s28, 2
      %s30 = scalar_select %p29, 0, %s28
      %s31 = ssub.s32 %s18, %s30
      %s32 = ssub.s32 %s19, %s26
      %s33 = sor.u32 %s31, %s32
      %p34 = scmp.eq.s32.totalorder %s33, 0
      %s36 = sadd.s32 %s35, 1
      %s37 = scalar_select %p34, %s35, %s36
      %p40 = pneg %p34
      %p41 = scmp.eq.s32.totalorder %s11, 5
      %p42 = por %p40, %p41
      %p43 = scmp.ne.s32.totalorder %s35, %s38
      %p44 = scmp.eq.s32.totalorder %s11, 0
      %p45 = por %p43, %p44
      %p46 = scmp.ne.s32.totalorder %s35, %s38
      %p47 = scmp.eq.s32.totalorder %s16, 5
      %p48 = por %p46, %p47
      %p49 = scmp.ne.s32.totalorder %s38, %s39
      %p50 = scmp.eq.s32.totalorder %s16, 0
      %p51 = por %p49, %p50
      %p52 = scmp.ne.s32.totalorder %s38, %s39
      %p53 = scmp.eq.s32.totalorder %s17, 5
      %p54 = por %p52, %p53
      %p56 = scmp.ne.s32.totalorder %s39, %s55
      %p57 = scmp.eq.s32.totalorder %s17, 0
      %p58 = por %p56, %p57
      %s59 = ssub.s32 %s18, %s30
      %p60 = scmp.eq.s32.totalorder %s59, 0
      %s62 = sadd.s32 %s61, 1
      %s63 = scalar_select %p60, %s61, %s62
      %p66 = pneg %p60
      %p67 = scmp.eq.s32.totalorder %s11, 5
      %p68 = por %p66, %p67
      %p69 = scmp.ne.s32.totalorder %s61, %s64
      %p70 = scmp.eq.s32.totalorder %s11, 0
      %p71 = por %p69, %p70
      %p72 = scmp.ne.s32.totalorder %s61, %s64
      %p73 = scmp.eq.s32.totalorder %s16, 5
      %p74 = por %p72, %p73
      %p75 = scmp.ne.s32.totalorder %s64, %s65
      %p76 = scmp.eq.s32.totalorder %s16, 0
      %p77 = por %p75, %p76
      %p78 = scmp.ne.s32.totalorder %s64, %s65
      %p79 = scmp.eq.s32.totalorder %s17, 5
      %p80 = por %p78, %p79
      %p82 = scmp.ne.s32.totalorder %s65, %s81
      %p83 = scmp.eq.s32.totalorder %s17, 0
      %p84 = por %p82, %p83
      %s85 = ssub.s32 %s18, %s30
      %p86 = scmp.eq.s32.totalorder %s85, 0
      %s88 = sadd.s32 %s87, 1
      %s89 = scalar_select %p86, %s87, %s88
      %p92 = pneg %p86
      %p93 = scmp.eq.s32.totalorder %s11, 5
      %p94 = por %p92, %p93
      %p95 = scmp.ne.s32.totalorder %s87, %s90
      %p96 = scmp.eq.s32.totalorder %s11, 0
      %p97 = por %p95, %p96
      %p98 = scmp.ne.s32.totalorder %s87, %s90
      %p99 = scmp.eq.s32.totalorder %s16, 5
      %p100 = por %p98, %p99
      %p101 = scmp.ne.s32.totalorder %s90, %s91
      %p102 = scmp.eq.s32.totalorder %s16, 0
      %p103 = por %p101, %p102
      %p104 = scmp.ne.s32.totalorder %s90, %s91
      %p105 = scmp.eq.s32.totalorder %s17, 5
      %p106 = por %p104, %p105
      %p108 = scmp.ne.s32.totalorder %s91, %s107
      %p109 = scmp.eq.s32.totalorder %s17, 0
      %p110 = por %p108, %p109
      %p111 = scmp.le.s32.totalorder 1, %s11
      %p112 = scmp.lt.s32.totalorder %s11, 7
      %p113 = pnand %p111, %p112
      %p114 = pneg %p113
      // Predicated region
      $region9: #{tpu_custom_call.1} parent=5 // pred_check
        _
      $region10: #{tpu_custom_call.1} parent=5 // pred_check_branch
        %116 = sbr.rel (%p113) target = $region12
      $region11: #{tpu_custom_call.1} parent=5 // pred_region
        %s117 = ssub.s32 %s11, 1
      $region12: #{tpu_custom_call.1} parent=5 // pred_fallthru
        _
      %p118 = scmp.lt.s32.totalorder %s11, 6
      // Predicated region
      $region13: #{tpu_custom_call.1} parent=5 // pred_check
        %p119 = pneg %p118
      $region14: #{tpu_custom_call.1} parent=5 // pred_check_branch
        %121 = sbr.rel (%p119) target = $region16
      $region15: #{tpu_custom_call.1} parent=5 // pred_region
        // Predicated region
        $region17: #{tpu_custom_call.1} parent=15 // pred_check
          %p122 = pneg %p45
        $region18: #{tpu_custom_call.1} parent=15 // pred_check_branch
          %124 = sbr.rel (%p122) target = $region20
        $region19: #{tpu_custom_call.1} parent=15 // pred_region
          %s125 = sand.u32 %s35, 1
          %s126 = scalar_lea.sflag [#allocation7], %s125
          %s127 = sand.u32 %s35, 1
          %s128 = smul.addr %s127, 8
          %s129 = scalar_lea.vmem [#allocation6], %s128
          %131 = vsyncadd %s126, 0
          %s132 = smul.addr %s18, 3
          %s133 = sadd.s32 %s19, %s132
          %s134 = smul.addr %s133, 8
          %s135 = scalar_lea.hbm %s0, %s134
          %s137 = sshll.u32 %s135, 4
          %s138 = int_to_ptr.hbm [resolvable:$true] %s137
          %s139 = sshll.u32 %s129, 4
          %s140 = int_to_ptr.vmem [resolvable:$true] %s139
          %142 = dma.hbm_to_vmem [thread:$0]  %s138, 128, %s140, %s126
        $region20: #{tpu_custom_call.1} parent=15 // pred_fallthru
          _
        // Predicated region
        $region21: #{tpu_custom_call.1} parent=15 // pred_check
          %p143 = pneg %p71
        $region22: #{tpu_custom_call.1} parent=15 // pred_check_branch
          %145 = sbr.rel (%p143) target = $region24
        $region23: #{tpu_custom_call.1} parent=15 // pred_region
          %p146 = scmp.lt.s32.totalorder %s18, 1
          %s147 = scalar_select %p146, %s18, 1
          %s148 = smul.addr %s147, 8
          %s149 = scalar_lea.vmem %s1, %s148
        $region24: #{tpu_custom_call.1} parent=15 // pred_fallthru
          _
      $region16: #{tpu_custom_call.1} parent=5 // pred_fallthru
        _
      %p150 = scmp.le.s32.totalorder 1, %s11
      %p151 = scmp.lt.s32.totalorder %s11, 7
      %p152 = pnand %p150, %p151
      %p153 = pneg %p152
      // Predicated region
      $region25: #{tpu_custom_call.1} parent=5 // pred_check
        _
      $region26: #{tpu_custom_call.1} parent=5 // pred_check_branch
        %155 = sbr.rel (%p152) target = $region28
      $region27: #{tpu_custom_call.1} parent=5 // pred_region
        %s156 = ssub.s32 %s11, 1
        %s157 = sand.u32 %s38, 1
        %s158 = scalar_lea.sflag [#allocation7], %s157
        %s159 = sand.u32 %s38, 1
        %s160 = smul.addr %s159, 8
        %s161 = scalar_lea.vmem [#allocation6], %s160
        // Predicated region
        $region29: #{tpu_custom_call.1} parent=27 // pred_check
          %p162 = pneg %p51
        $region30: #{tpu_custom_call.1} parent=27 // pred_check_branch
          %164 = sbr.rel (%p162) target = $region32
        $region31: #{tpu_custom_call.1} parent=27 // pred_region
          %166 = dma.done %s158, 128
        $region32: #{tpu_custom_call.1} parent=27 // pred_fallthru
          _
        %s167 = sand.u32 %s38, 1
        %s168 = scalar_lea.sflag [#allocation7], %s167
        %s169 = sand.u32 %s38, 1
        %s170 = smul.addr %s169, 8
        %s171 = scalar_lea.vmem [#allocation6], %s170
        %p172 = pneg %p51
        %p173 = pneg %p48
        %p174 = scmp.lt.s32.totalorder %s20, 1
        %s175 = scalar_select %p174, %s20, 1
        %s176 = smul.addr %s175, 8
        %s177 = scalar_lea.vmem %s1, %s176
        %p178 = pneg %p77
        %p179 = pneg %p74
        %p180 = pneg %p103
        %p181 = pneg %p100
        %p182 = scmp.lt.s32.totalorder %s20, 1
        %s183 = scalar_select %p182, %s20, 1
        %s184 = smul.addr %s183, 8
        %s185 = scalar_lea.vmem %s2, %s184
        %p186 = scmp.lt.s32.totalorder %s20, 1
        %s187 = scalar_select %p186, %s20, 1
        %s188 = smul.addr %s187, 8
        %s189 = scalar_lea.vmem %s1, %s188
        %p190 = scmp.lt.s32.totalorder %s20, 1
        %s191 = scalar_select %p190, %s20, 1
        %s192 = smul.addr %s191, 8
        %s193 = scalar_lea.vmem %s2, %s192
        %v194 = vld [vmem:[%s161] sm:$0xff]
        %v195 = vld [vmem:[%s189] sm:$0xff]
        %p196 = scmp.eq.s32.totalorder %s21, 0
        // Predicated region
        $region33: #{tpu_custom_call.1} parent=27 // pred_check
          %p197 = pneg %p196
        $region34: #{tpu_custom_call.1} parent=27 // pred_check_branch
          %199 = sbr.rel (%p197) target = $region36
        $region35: #{tpu_custom_call.1} parent=27 // pred_region
          %vm200 = vcmask 7168
          %201 = vst.msk [vmem:[#allocation2] sm:$0xff] %vm200, -inf
          %202 = vst.msk [vmem:[#allocation3] sm:$0xff] %vm200, 0.0
          %203 = vst.msk [vmem:[#allocation4] sm:$0xff] %vm200, 0
          %204 = vst.msk [vmem:[#allocation5] sm:$0xff] %vm200, 0.0
        $region36: #{tpu_custom_call.1} parent=27 // pred_fallthru
          _
        %v205 = vlaneseq
        %v206 = vand.u32 %v205, 127
        %s207 = smul.u32 %s21, 128
        %v208 = vstv %s207
        %v209 = vadd.s32 %v206, %v208
        %210 = vmax.xlane.f32.xlu0 %v194
        %v211 = vpop.xlane.xlu0 %210
        %vm212 = vcmp.eq.f32.partialorder %v194, %v211
        %v213 = vsel %vm212, %v209, 1073741824
        %v214 = vand.u32 %v213, 65535
        %v215 = vshra.s32 %v213, 16
        %v216 = vcvt.s32.f32 %v214
        %v217 = vcvt.s32.f32 %v215
        %218 = vmin.xlane.f32.xlu0 %v217
        %v219 = vpop.xlane.xlu0 %218
        %vm220 = vcmp.eq.f32.partialorder %v217, %v219
        %v221 = vsel %vm220, %v216, inf
        %222 = vmin.xlane.f32.xlu0 %v221
        %v223 = vpop.xlane.xlu0 %222
        %v224 = vcvt.f32.s32 %v223
        %v225 = vcvt.f32.s32 %v219
        %v226 = vshll.u32 %v225, 16
        %v227 = vadd.s32 %v226, %v224
        %v228 = vld [vmem:[#allocation2] sm:$0xff]
        %v229 = vmax.f32 %v228, %v211
        %vm230 = vcmp.gt.f32.partialorder %v211, %v228
        %v231 = vld [vmem:[#allocation4] sm:$0xff]
        %v232 = vsel %vm230, %v227, %v231
        %vm233 = vcmask 7168
        %234 = vst.msk [vmem:[#allocation4] sm:$0xff] %vm233, %v232
        %235 = vst.msk [vmem:[#allocation2] sm:$0xff] %vm233, %v229
        %v236 = vld [vmem:[#allocation3] sm:$0xff]
        %v237 = vsub.f32 %v228, %v229
        %v238 = vmul.f32 %v237, 1.442695
        %v239 = vpow.pop %v238
        %v240 = vmul.f32 %v236, %v239
        %242 = vset.pattern.permute.xlu0 0
        %243 = vperm.xlu0 %242, %v229
        %v244 = vpop.permute.xlu0 %243
        %v246 = vsub.f32 %v194, %v244
        %v247 = vmul.f32 %v246, 1.442695
        %v248 = vpow.pop %v247
        %249 = vadd.xlane.f32.xlu0 %v248
        %v250 = vpop.xlane.xlu0 %249
        %v251 = vadd.f32 %v240, %v250
        %252 = vst.msk [vmem:[#allocation3] sm:$0xff] %vm233, %v251
        %v253 = vld [vmem:[#allocation5] sm:$0xff]
        %254 = vset.pattern.permute.xlu0 0
        %255 = vperm.xlu0 %254, %v195
        %v256 = vpop.permute.xlu0 %255
        %vm257 = vcmp.eq.s32.totalorder %v209, %v256
        %v258 = vsel %vm257, %v194, 0.0
        %259 = vadd.xlane.f32.xlu0 %v258
        %v260 = vpop.xlane.xlu0 %259
        %v261 = vadd.f32 %v253, %v260
        %262 = vst.msk [vmem:[#allocation5] sm:$0xff] %vm233, %v261
        %p263 = scmp.eq.s32.totalorder %s21, 2
        // Predicated region
        $region37: #{tpu_custom_call.1} parent=27 // pred_check
          %p264 = pneg %p263
        $region38: #{tpu_custom_call.1} parent=27 // pred_check_branch
          %266 = sbr.rel (%p264) target = $region40
        $region39: #{tpu_custom_call.1} parent=27 // pred_region
          %v267 = vld [vmem:[#allocation5] sm:$0xff]
          %v268 = vld [vmem:[#allocation2] sm:$0xff]
          %v269 = vsub.f32 %v267, %v268
          %v270 = vmul.f32 %v269, 1.442695
          %v271 = vpow.pop %v270
          %v272 = vld [vmem:[#allocation3] sm:$0xff]
          %v273 = vrcp.pop %v272
          %v274 = vmul.f32 %v272, %v273
          %v275 = vsub.f32 1.0, %v274
          %v276 = vmul.f32 %v273, %v275
          %v277 = vadd.f32 %v273, %v276
          %vm278 = vweird.f32 %v272
          %vm279 = vweird.f32 %v273
          %vm280 = vmor %vm278, %vm279
          %v281 = vsel %vm280, %v273, %v277
          %v282 = vand.u32 2147483647, %v272
          %vm283 = vcmp.eq.f32.partialorder %v282, 8.507059e+37
          %v284 = vand.u32 %v272, 2147483648
          %v285 = vor.u32 1.1754944e-38, %v284
          %v286 = vsel %vm283, %v285, %v281
          %v287 = vmul.f32 %v271, %v286
          %v288 = vld [vmem:[#allocation4] sm:$0xff]
          %vm289 = vcmp.eq.s32.totalorder %v288, %v195
          %v290 = vsel %vm289, %v287, 0.0
          %291 = vst.msk [vmem:[%s193] sm:$0xff] %vm233, %v290
        $region40: #{tpu_custom_call.1} parent=27 // pred_fallthru
          _
        %p292 = scmp.lt.s32.totalorder %s20, 1
        %s293 = scalar_select %p292, %s20, 1
        %s294 = smul.addr %s293, 8
        %s295 = scalar_lea.vmem %s2, %s294
        // Predicated region
        $region41: #{tpu_custom_call.1} parent=27 // pred_check
          %p296 = pneg %p100
        $region42: #{tpu_custom_call.1} parent=27 // pred_check_branch
          %298 = sbr.rel (%p296) target = $region44
        $region43: #{tpu_custom_call.1} parent=27 // pred_region
          _
        $region44: #{tpu_custom_call.1} parent=27 // pred_fallthru
          _
      $region28: #{tpu_custom_call.1} parent=5 // pred_fallthru
        _
      %p299 = scmp.le.s32.totalorder 2, %s11
      // Predicated region
      $region45: #{tpu_custom_call.1} parent=5 // pred_check
        %p300 = pneg %p299
      $region46: #{tpu_custom_call.1} parent=5 // pred_check_branch
        %302 = sbr.rel (%p300) target = $region48
      $region47: #{tpu_custom_call.1} parent=5 // pred_region
        %s303 = ssub.s32 %s11, 2
        // Predicated region
        $region49: #{tpu_custom_call.1} parent=47 // pred_check
          %p304 = pneg %p106
        $region50: #{tpu_custom_call.1} parent=47 // pred_check_branch
          %306 = sbr.rel (%p304) target = $region52
        $region51: #{tpu_custom_call.1} parent=47 // pred_region
          %p307 = scmp.lt.s32.totalorder %s22, 1
          %s308 = scalar_select %p307, %s22, 1
          %s309 = smul.addr %s308, 8
          %s310 = scalar_lea.vmem %s2, %s309
        $region52: #{tpu_custom_call.1} parent=47 // pred_fallthru
          _
      $region48: #{tpu_custom_call.1} parent=5 // pred_fallthru
        _
    $region6: #{tpu_custom_call.1} parent=1 // loop_footer
      %s15 = sadd.s32 1, %s11
    $region7: #{tpu_custom_call.1} parent=1 // loop_footer_branch
      %10 = sbr.rel target = $region3
    $region8: #{tpu_custom_call.1} parent=1 // loop_exit
      _
    %311 = vsyncpa [#allocation7], 1
    %s312 = scalar_lea.sflag [#allocation7], 1
    %313 = vsyncpa %s312, 1

</llo_original>
